<compile_context>
chip_gen: v7x
topology: tpu7x:2x2x1
jax: 0.10.0
libtpu: 0.0.40
codegen_flags: <defaults>
</compile_context>

<pallas_src>
import jax
import jax.numpy as jnp
import numpy as np
from jax.experimental import pallas as pl
from jax.experimental.pallas import tpu as pltpu

LANE = 128   # node-tile granularity (lane width)
SUB = 8      # sublane granularity for the graph axis
TN_MAX = 2048   # cap on the node reduction tile (keeps VMEM small on v7x/v5e)
TG_MAX = 256    # cap on the graph tile (MXU-native row count on v6e/v7x)


def _round_up(x, m):
    return ((x + m - 1) // m) * m


def _pad2(a, rows, cols):
    return jnp.pad(a, ((0, rows - a.shape[0]), (0, cols - a.shape[1])))


# ----------------------------------------------------------------------------
# Fused kernel: binary-one-hot mean-pool accumulation + scaled MLP head.
# Grid = (graph tiles [parallel], node tiles [arbitrary reduction]).
# ----------------------------------------------------------------------------
def _sec_path_kernel(p_ref, x_ref, inv_ref,
                     w1_ref, b1_ref, w2_ref, b2_ref, w3_ref, b3_ref,
                     w4_ref, b4_ref, w5_ref, b5_ref,
                     o_ref, acc_ref):
    k = pl.program_id(1)

    @pl.when(k == 0)
    def _():
        acc_ref[...] = jnp.zeros_like(acc_ref)

    # Partial sum of the pooled features: P_tile [TG, TN] @ X_tile [TN, F].
    # P is binary (0/1) so bf16 inputs are exact; accumulate in f32.
    acc_ref[...] += jnp.dot(p_ref[...], x_ref[...],
                            preferred_element_type=jnp.float32)

    @pl.when(k == pl.num_programs(1) - 1)
    def _():
        # sum -> mean via f32 per-graph 1/count scaling, then the 5-layer head.
        h = acc_ref[...] * inv_ref[...]
        for w_ref, b_ref in ((w1_ref, b1_ref), (w2_ref, b2_ref),
                             (w3_ref, b3_ref), (w4_ref, b4_ref),
                             (w5_ref, b5_ref)):
            h = jnp.dot(h, w_ref[...],
                        preferred_element_type=jnp.float32) + b_ref[...]
            h = jnp.maximum(h, 0.0)
        o_ref[...] = h.astype(o_ref.dtype)


def sec_path_fused(pool_p, bert_p, inv_counts, ws, bs, *, tg, tn):
    """pool_p: [G_pad, N_pad] (binary), bert_p: [N_pad, F] (natural width),
    inv_counts: [G_pad, 1] f32, ws/bs: 5 natural-shape weight/bias pairs."""
    g_pad, n_pad = pool_p.shape
    feat = bert_p.shape[1]
    out_dim = ws[-1].shape[1]
    g_tiles = g_pad // tg
    n_tiles = n_pad // tn

    def full_spec(a):
        return pl.BlockSpec(a.shape, lambda g, k: (0, 0))

    wb_specs, wb_args = [], []
    for w, b in zip(ws, bs):
        wb_specs += [full_spec(w), full_spec(b)]
        wb_args += [w, b]

    return pl.pallas_call(
        _sec_path_kernel,
        out_shape=jax.ShapeDtypeStruct((g_pad, out_dim), jnp.float32),
        grid=(g_tiles, n_tiles),
        in_specs=[
            pl.BlockSpec((tg, tn), lambda g, k: (g, k)),      # binary pool tile
            pl.BlockSpec((tn, feat), lambda g, k: (k, 0)),    # bert tile (natural F)
            pl.BlockSpec((tg, 1), lambda g, k: (g, 0)),       # 1/count per graph
            *wb_specs,
        ],
        out_specs=pl.BlockSpec((tg, out_dim), lambda g, k: (g, 0)),
        scratch_shapes=[pltpu.VMEM((tg, feat), jnp.float32)],
        compiler_params=pltpu.CompilerParams(
            dimension_semantics=("parallel", "arbitrary")),
    )(pool_p, bert_p, inv_counts, *wb_args)


# ----------------------------------------------------------------------------
# Parameters + forward glue (plain JAX; padding / dtype casts done once).
# ----------------------------------------------------------------------------
def _glorot(key, fan_in, fan_out):
    lim = jnp.sqrt(6.0 / (fan_in + fan_out))
    return jax.random.uniform(key, (fan_in, fan_out), jnp.float32, -lim, lim)


def init_params(feature_num, out_channels=32, seed=0):
    dims = [feature_num, 32, 64, 128, 64, out_channels]
    keys = jax.random.split(jax.random.PRNGKey(seed), 2 * (len(dims) - 1))
    ws, bs = [], []
    for li in range(len(dims) - 1):
        ws.append(_glorot(keys[2 * li], dims[li], dims[li + 1]))
        bs.append(jax.random.uniform(keys[2 * li + 1], (1, dims[li + 1]),
                                     jnp.float32, -0.1, 0.1))
    return ws, bs


def sec_path_forward(ws, bs, x_raw, batch, num_graphs, out_channels,
                     *, compute_dtype=jnp.bfloat16, node_tile=None):
    num_nodes = x_raw.shape[0]
    bert = x_raw[:, 37:]                         # bert_feature = x[:, 37:]
    feature_num = bert.shape[1]

    # Node (reduction) tiling: multiple of 128, up to TN_MAX.
    n_pad128 = _round_up(max(num_nodes, 1), LANE)
    tn = min(TN_MAX, n_pad128) if node_tile is None else node_tile
    n_pad = _round_up(num_nodes, tn)

    # Graph tiling: multiple of 8, capped at TG_MAX.
    g_pad8 = _round_up(max(num_graphs, 1), SUB)
    tg = min(TG_MAX, g_pad8)
    g_pad = _round_up(g_pad8, tg)

    # Binary pooling matrix (exact even in bf16); 1/count applied in-kernel.
    onehot = (batch[None, :] == jnp.arange(num_graphs)[:, None]).astype(jnp.float32)
    counts = jnp.sum(onehot, axis=1, keepdims=True)
    inv_counts = 1.0 / jnp.maximum(counts, 1.0)

    pool_p = _pad2(onehot, g_pad, n_pad).astype(compute_dtype)
    bert_p = _pad2(bert, n_pad, feature_num).astype(compute_dtype)
    inv_p = _pad2(inv_counts, g_pad, 1)          # stays f32

    out_p = sec_path_fused(pool_p, bert_p, inv_p, ws, bs, tg=tg, tn=tn)
    return out_p[:num_graphs, :out_channels]


def sec_path_reference(ws, bs, x_raw, batch, num_graphs):
    bert = x_raw[:, 37:]
    onehot = (batch[None, :] == jnp.arange(num_graphs)[:, None]).astype(jnp.float32)
    counts = jnp.maximum(jnp.sum(onehot, axis=1, keepdims=True), 1.0)
    h = (onehot / counts) @ bert
    for w, b in zip(ws, bs):
        h = jnp.maximum(h @ w + b, 0.0)
    return h


# ----------------------------------------------------------------------------
# Main
# ----------------------------------------------------------------------------
if __name__ == "__main__":
    feature_num = 16                 # bert feature width (= raw_dim - 37)
    out_channels = 32
    num_graphs = 2
    nodes_per_graph = 96             # 192 nodes
    num_nodes = num_graphs * nodes_per_graph
    raw_feat_dim = 37 + feature_num

    key = jax.random.PRNGKey(0)
    x_raw = jax.random.normal(key, (num_nodes, raw_feat_dim), jnp.float32)
    batch = jnp.repeat(jnp.arange(num_graphs, dtype=jnp.int32), nodes_per_graph)

    ws, bs = init_params(feature_num, out_channels=out_channels, seed=0)
    ref = sec_path_reference(ws, bs, x_raw, batch, num_graphs)

    # 1) f32 streaming path with a forced 128-node tile -> 2 reduction steps,
    #    exercises the accumulator; should match the f32 reference tightly.
    out_f32 = sec_path_forward(ws, bs, x_raw, batch, num_graphs, out_channels,
                               compute_dtype=jnp.float32, node_tile=128)
    out_f32 = jax.block_until_ready(out_f32)
    assert out_f32.shape == (num_graphs, out_channels)
    np.testing.assert_allclose(np.asarray(out_f32), np.asarray(ref),
                               rtol=1e-4, atol=1e-4)

    # 2) Default fast path: bf16 streaming of P/bert (f32 accumulation + head),
    #    auto node tile.  bf16 input rounding -> looser tolerance.
    out_bf16 = sec_path_forward(ws, bs, x_raw, batch, num_graphs, out_channels)
    out_bf16 = jax.block_until_ready(out_bf16)
    assert out_bf16.shape == (num_graphs, out_channels)
    np.testing.assert_allclose(np.asarray(out_bf16), np.asarray(ref),
                               rtol=2e-2, atol=2e-2)

    print("KERNEL_OK")
</pallas_src>

<mosaic_0001>
module attributes {stable_mosaic.version = 11 : i64} {
  func.func @_sec_path_kernel(%arg0: i32, %arg1: i32, %arg2: memref<8x128xf32, #tpu.memory_space<vmem>>, %arg3: memref<128x16xf32, #tpu.memory_space<vmem>>, %arg4: memref<8x1xf32, #tpu.memory_space<vmem>>, %arg5: memref<16x32xf32, #tpu.memory_space<vmem>>, %arg6: memref<1x32xf32, #tpu.memory_space<vmem>>, %arg7: memref<32x64xf32, #tpu.memory_space<vmem>>, %arg8: memref<1x64xf32, #tpu.memory_space<vmem>>, %arg9: memref<64x128xf32, #tpu.memory_space<vmem>>, %arg10: memref<1x128xf32, #tpu.memory_space<vmem>>, %arg11: memref<128x64xf32, #tpu.memory_space<vmem>>, %arg12: memref<1x64xf32, #tpu.memory_space<vmem>>, %arg13: memref<64x32xf32, #tpu.memory_space<vmem>>, %arg14: memref<1x32xf32, #tpu.memory_space<vmem>>, %arg15: memref<8x32xf32, #tpu.memory_space<vmem>>, %arg16: memref<8x16xf32, #tpu.memory_space<vmem>>) attributes {dimension_semantics = [#tpu.dimension_semantics<parallel>, #tpu.dimension_semantics<arbitrary>], iteration_bounds = array<i64: 1, 2>, scalar_prefetch = 0 : i64, scratch_operands = 1 : i64, tpu.core_type = #tpu.core_type<tc>, window_params = [{transform_indices = @transform_0, window_bounds = array<i64: 8, 128>}, {transform_indices = @transform_1, window_bounds = array<i64: 128, 16>}, {transform_indices = @transform_2, window_bounds = array<i64: 8, 1>}, {pipeline_mode = #tpu.pipeline_mode<synchronous>, transform_indices = @transform_3, window_bounds = array<i64: 16, 32>}, {pipeline_mode = #tpu.pipeline_mode<synchronous>, transform_indices = @transform_4, window_bounds = array<i64: 1, 32>}, {pipeline_mode = #tpu.pipeline_mode<synchronous>, transform_indices = @transform_5, window_bounds = array<i64: 32, 64>}, {pipeline_mode = #tpu.pipeline_mode<synchronous>, transform_indices = @transform_6, window_bounds = array<i64: 1, 64>}, {pipeline_mode = #tpu.pipeline_mode<synchronous>, transform_indices = @transform_7, window_bounds = array<i64: 64, 128>}, {pipeline_mode = #tpu.pipeline_mode<synchronous>, transform_indices = @transform_8, window_bounds = array<i64: 1, 128>}, {pipeline_mode = #tpu.pipeline_mode<synchronous>, transform_indices = @transform_9, window_bounds = array<i64: 128, 64>}, {pipeline_mode = #tpu.pipeline_mode<synchronous>, transform_indices = @transform_10, window_bounds = array<i64: 1, 64>}, {pipeline_mode = #tpu.pipeline_mode<synchronous>, transform_indices = @transform_11, window_bounds = array<i64: 64, 32>}, {pipeline_mode = #tpu.pipeline_mode<synchronous>, transform_indices = @transform_12, window_bounds = array<i64: 1, 32>}, {transform_indices = @transform_13, window_bounds = array<i64: 8, 32>}]} {
    %c0_i32 = arith.constant 0 : i32
    %0 = arith.cmpi eq, %arg1, %c0_i32 : i32
    %1 = arith.extui %0 : i1 to i32
    %c0_i32_0 = arith.constant 0 : i32
    %2 = arith.cmpi ne, %1, %c0_i32_0 : i32
    scf.if %2 {
      %cst_9 = arith.constant 0.000000e+00 : f32
      %12 = vector.broadcast %cst_9 : f32 to vector<8x16xf32>
      %c0_10 = arith.constant 0 : index
      %c0_11 = arith.constant 0 : index
      %13 = vector.load %arg16[%c0_10, %c0_11] : memref<8x16xf32, #tpu.memory_space<vmem>>, vector<8x16xf32>
      tpu.vector_store %arg16[%c0_10, %c0_11], %12 {strides = array<i32>} : memref<8x16xf32, #tpu.memory_space<vmem>>, vector<8x16xf32>,
    } else {
    }
    %c0 = arith.constant 0 : index
    %c0_1 = arith.constant 0 : index
    %3 = vector.load %arg16[%c0, %c0_1] : memref<8x16xf32, #tpu.memory_space<vmem>>, vector<8x16xf32>
    %c0_2 = arith.constant 0 : index
    %c0_3 = arith.constant 0 : index
    %4 = vector.load %arg2[%c0_2, %c0_3] : memref<8x128xf32, #tpu.memory_space<vmem>>, vector<8x128xf32>
    %c0_4 = arith.constant 0 : index
    %c0_5 = arith.constant 0 : index
    %5 = vector.load %arg3[%c0_4, %c0_5] : memref<128x16xf32, #tpu.memory_space<vmem>>, vector<128x16xf32>
    %cst = arith.constant dense<0.000000e+00> : vector<8x16xf32>
    %6 = tpu.matmul %4, %5, %cst {dimension_numbers = #tpu.dot_dimension_numbers<[1], [0], [0], [1], [0, 0, 1, 1], [], []>} : vector<8x128xf32>, vector<128x16xf32>, vector<8x16xf32> -> vector<8x16xf32>
    %7 = arith.addf %3, %6 : vector<8x16xf32>
    %c0_6 = arith.constant 0 : index
    %c0_7 = arith.constant 0 : index
    %8 = vector.load %arg16[%c0_6, %c0_7] : memref<8x16xf32, #tpu.memory_space<vmem>>, vector<8x16xf32>
    tpu.vector_store %arg16[%c0_6, %c0_7], %7 {strides = array<i32>} : memref<8x16xf32, #tpu.memory_space<vmem>>, vector<8x16xf32>,
    %c1_i32 = arith.constant 1 : i32
    %9 = arith.cmpi eq, %arg1, %c1_i32 : i32
    %10 = arith.extui %9 : i1 to i32
    %c0_i32_8 = arith.constant 0 : i32
    %11 = arith.cmpi ne, %10, %c0_i32_8 : i32
    scf.if %11 {
      %c0_9 = arith.constant 0 : index
      %c0_10 = arith.constant 0 : index
      %12 = vector.load %arg16[%c0_9, %c0_10] : memref<8x16xf32, #tpu.memory_space<vmem>>, vector<8x16xf32>
      %c0_11 = arith.constant 0 : index
      %c0_12 = arith.constant 0 : index
      %13 = vector.load %arg4[%c0_11, %c0_12] : memref<8x1xf32, #tpu.memory_space<vmem>>, vector<8x1xf32>
      %14 = vector.broadcast %13 : vector<8x1xf32> to vector<8x16xf32>
      %15 = arith.mulf %12, %14 : vector<8x16xf32>
      %c0_13 = arith.constant 0 : index
      %c0_14 = arith.constant 0 : index
      %16 = vector.load %arg5[%c0_13, %c0_14] : memref<16x32xf32, #tpu.memory_space<vmem>>, vector<16x32xf32>
      %cst_15 = arith.constant dense<0.000000e+00> : vector<8x32xf32>
      %17 = tpu.matmul %15, %16, %cst_15 {dimension_numbers = #tpu.dot_dimension_numbers<[1], [0], [0], [1], [0, 0, 1, 1], [], []>} : vector<8x16xf32>, vector<16x32xf32>, vector<8x32xf32> -> vector<8x32xf32>
      %c0_16 = arith.constant 0 : index
      %c0_17 = arith.constant 0 : index
      %18 = vector.load %arg6[%c0_16, %c0_17] : memref<1x32xf32, #tpu.memory_space<vmem>>, vector<1x32xf32>
      %19 = vector.broadcast %18 : vector<1x32xf32> to vector<8x32xf32>
      %20 = arith.addf %17, %19 : vector<8x32xf32>
      %cst_18 = arith.constant 0.000000e+00 : f32
      %21 = vector.broadcast %cst_18 : f32 to vector<8x32xf32>
      %22 = arith.maximumf %20, %21 : vector<8x32xf32>
      %c0_19 = arith.constant 0 : index
      %c0_20 = arith.constant 0 : index
      %23 = vector.load %arg7[%c0_19, %c0_20] : memref<32x64xf32, #tpu.memory_space<vmem>>, vector<32x64xf32>
      %cst_21 = arith.constant dense<0.000000e+00> : vector<8x64xf32>
      %24 = tpu.matmul %22, %23, %cst_21 {dimension_numbers = #tpu.dot_dimension_numbers<[1], [0], [0], [1], [0, 0, 1, 1], [], []>} : vector<8x32xf32>, vector<32x64xf32>, vector<8x64xf32> -> vector<8x64xf32>
      %c0_22 = arith.constant 0 : index
      %c0_23 = arith.constant 0 : index
      %25 = vector.load %arg8[%c0_22, %c0_23] : memref<1x64xf32, #tpu.memory_space<vmem>>, vector<1x64xf32>
      %26 = vector.broadcast %25 : vector<1x64xf32> to vector<8x64xf32>
      %27 = arith.addf %24, %26 : vector<8x64xf32>
      %cst_24 = arith.constant 0.000000e+00 : f32
      %28 = vector.broadcast %cst_24 : f32 to vector<8x64xf32>
      %29 = arith.maximumf %27, %28 : vector<8x64xf32>
      %c0_25 = arith.constant 0 : index
      %c0_26 = arith.constant 0 : index
      %30 = vector.load %arg9[%c0_25, %c0_26] : memref<64x128xf32, #tpu.memory_space<vmem>>, vector<64x128xf32>
      %cst_27 = arith.constant dense<0.000000e+00> : vector<8x128xf32>
      %31 = tpu.matmul %29, %30, %cst_27 {dimension_numbers = #tpu.dot_dimension_numbers<[1], [0], [0], [1], [0, 0, 1, 1], [], []>} : vector<8x64xf32>, vector<64x128xf32>, vector<8x128xf32> -> vector<8x128xf32>
      %c0_28 = arith.constant 0 : index
      %c0_29 = arith.constant 0 : index
      %32 = vector.load %arg10[%c0_28, %c0_29] : memref<1x128xf32, #tpu.memory_space<vmem>>, vector<1x128xf32>
      %33 = vector.broadcast %32 : vector<1x128xf32> to vector<8x128xf32>
      %34 = arith.addf %31, %33 : vector<8x128xf32>
      %cst_30 = arith.constant 0.000000e+00 : f32
      %35 = vector.broadcast %cst_30 : f32 to vector<8x128xf32>
      %36 = arith.maximumf %34, %35 : vector<8x128xf32>
      %c0_31 = arith.constant 0 : index
      %c0_32 = arith.constant 0 : index
      %37 = vector.load %arg11[%c0_31, %c0_32] : memref<128x64xf32, #tpu.memory_space<vmem>>, vector<128x64xf32>
      %cst_33 = arith.constant dense<0.000000e+00> : vector<8x64xf32>
      %38 = tpu.matmul %36, %37, %cst_33 {dimension_numbers = #tpu.dot_dimension_numbers<[1], [0], [0], [1], [0, 0, 1, 1], [], []>} : vector<8x128xf32>, vector<128x64xf32>, vector<8x64xf32> -> vector<8x64xf32>
      %c0_34 = arith.constant 0 : index
      %c0_35 = arith.constant 0 : index
      %39 = vector.load %arg12[%c0_34, %c0_35] : memref<1x64xf32, #tpu.memory_space<vmem>>, vector<1x64xf32>
      %40 = vector.broadcast %39 : vector<1x64xf32> to vector<8x64xf32>
      %41 = arith.addf %38, %40 : vector<8x64xf32>
      %cst_36 = arith.constant 0.000000e+00 : f32
      %42 = vector.broadcast %cst_36 : f32 to vector<8x64xf32>
      %43 = arith.maximumf %41, %42 : vector<8x64xf32>
      %c0_37 = arith.constant 0 : index
      %c0_38 = arith.constant 0 : index
      %44 = vector.load %arg13[%c0_37, %c0_38] : memref<64x32xf32, #tpu.memory_space<vmem>>, vector<64x32xf32>
      %cst_39 = arith.constant dense<0.000000e+00> : vector<8x32xf32>
      %45 = tpu.matmul %43, %44, %cst_39 {dimension_numbers = #tpu.dot_dimension_numbers<[1], [0], [0], [1], [0, 0, 1, 1], [], []>} : vector<8x64xf32>, vector<64x32xf32>, vector<8x32xf32> -> vector<8x32xf32>
      %c0_40 = arith.constant 0 : index
      %c0_41 = arith.constant 0 : index
      %46 = vector.load %arg14[%c0_40, %c0_41] : memref<1x32xf32, #tpu.memory_space<vmem>>, vector<1x32xf32>
      %47 = vector.broadcast %46 : vector<1x32xf32> to vector<8x32xf32>
      %48 = arith.addf %45, %47 : vector<8x32xf32>
      %cst_42 = arith.constant 0.000000e+00 : f32
      %49 = vector.broadcast %cst_42 : f32 to vector<8x32xf32>
      %50 = arith.maximumf %48, %49 : vector<8x32xf32>
      %c0_43 = arith.constant 0 : index
      %c0_44 = arith.constant 0 : index
      %51 = vector.load %arg15[%c0_43, %c0_44] : memref<8x32xf32, #tpu.memory_space<vmem>>, vector<8x32xf32>
      tpu.vector_store %arg15[%c0_43, %c0_44], %50 {strides = array<i32>} : memref<8x32xf32, #tpu.memory_space<vmem>>, vector<8x32xf32>,
    } else {
    }
    return
  }
  func.func @transform_0(%arg0: i32, %arg1: i32) -> (i32, i32) {
    %c0_i32 = arith.constant 0 : i32
    return %arg0, %arg1 : i32, i32
  }
  func.func @transform_1(%arg0: i32, %arg1: i32) -> (i32, i32) {
    %c0_i32 = arith.constant 0 : i32
    %c0_i32_0 = arith.constant 0 : i32
    return %arg1, %c0_i32 : i32, i32
  }
  func.func @transform_2(%arg0: i32, %arg1: i32) -> (i32, i32) {
    %c0_i32 = arith.constant 0 : i32
    %c0_i32_0 = arith.constant 0 : i32
    return %arg0, %c0_i32 : i32, i32
  }
  func.func @transform_3(%arg0: i32, %arg1: i32) -> (i32, i32) {
    %c0_i32 = arith.constant 0 : i32
    %c0_i32_0 = arith.constant 0 : i32
    %c0_i32_1 = arith.constant 0 : i32
    return %c0_i32, %c0_i32_0 : i32, i32
  }
  func.func @transform_4(%arg0: i32, %arg1: i32) -> (i32, i32) {
    %c0_i32 = arith.constant 0 : i32
    %c0_i32_0 = arith.constant 0 : i32
    %c0_i32_1 = arith.constant 0 : i32
    return %c0_i32, %c0_i32_0 : i32, i32
  }
  func.func @transform_5(%arg0: i32, %arg1: i32) -> (i32, i32) {
    %c0_i32 = arith.constant 0 : i32
    %c0_i32_0 = arith.constant 0 : i32
    %c0_i32_1 = arith.constant 0 : i32
    return %c0_i32, %c0_i32_0 : i32, i32
  }
  func.func @transform_6(%arg0: i32, %arg1: i32) -> (i32, i32) {
    %c0_i32 = arith.constant 0 : i32
    %c0_i32_0 = arith.constant 0 : i32
    %c0_i32_1 = arith.constant 0 : i32
    return %c0_i32, %c0_i32_0 : i32, i32
  }
  func.func @transform_7(%arg0: i32, %arg1: i32) -> (i32, i32) {
    %c0_i32 = arith.constant 0 : i32
    %c0_i32_0 = arith.constant 0 : i32
    %c0_i32_1 = arith.constant 0 : i32
    return %c0_i32, %c0_i32_0 : i32, i32
  }
  func.func @transform_8(%arg0: i32, %arg1: i32) -> (i32, i32) {
    %c0_i32 = arith.constant 0 : i32
    %c0_i32_0 = arith.constant 0 : i32
    %c0_i32_1 = arith.constant 0 : i32
    return %c0_i32, %c0_i32_0 : i32, i32
  }
  func.func @transform_9(%arg0: i32, %arg1: i32) -> (i32, i32) {
    %c0_i32 = arith.constant 0 : i32
    %c0_i32_0 = arith.constant 0 : i32
    %c0_i32_1 = arith.constant 0 : i32
    return %c0_i32, %c0_i32_0 : i32, i32
  }
  func.func @transform_10(%arg0: i32, %arg1: i32) -> (i32, i32) {
    %c0_i32 = arith.constant 0 : i32
    %c0_i32_0 = arith.constant 0 : i32
    %c0_i32_1 = arith.constant 0 : i32
    return %c0_i32, %c0_i32_0 : i32, i32
  }
  func.func @transform_11(%arg0: i32, %arg1: i32) -> (i32, i32) {
    %c0_i32 = arith.constant 0 : i32
    %c0_i32_0 = arith.constant 0 : i32
    %c0_i32_1 = arith.constant 0 : i32
    return %c0_i32, %c0_i32_0 : i32, i32
  }
  func.func @transform_12(%arg0: i32, %arg1: i32) -> (i32, i32) {
    %c0_i32 = arith.constant 0 : i32
    %c0_i32_0 = arith.constant 0 : i32
    %c0_i32_1 = arith.constant 0 : i32
    return %c0_i32, %c0_i32_0 : i32, i32
  }
  func.func @transform_13(%arg0: i32, %arg1: i32) -> (i32, i32) {
    %c0_i32 = arith.constant 0 : i32
    %c0_i32_0 = arith.constant 0 : i32
    return %arg0, %c0_i32 : i32, i32
  }
}

</mosaic_0001>

<llo_original>
// kernel: tpu_custom_call.1
$region0: #{tpu_custom_call.1}
  #allocation0 [shape = 'u32[]', space=smem, size = 0x4, offset = 0x4, fixed_abs, tag = 'smem constant byte address 0x4 - core index']
  #allocation1 [shape = 'u32[144,128]{1,0:T(1,128)}', space=vmem, size = 0x12000, scoped, tag = 'internal scratch']
  #allocation2 [shape = 'f32[8,16]{1,0:T(8,128)}', space=vmem, size = 0x1000, scoped, tag = 'scratch operand']
  %s0 = inlined_call_operand.vmem [shape: f32[8,256], index: 0, kind: input, shape index: {}]
  %s1 = inlined_call_operand.vmem [shape: f32[256,16], index: 1, kind: input, shape index: {}]
  %s2 = inlined_call_operand.vmem [shape: f32[8,1], index: 2, kind: input, shape index: {}]
  %s3 = inlined_call_operand.vmem [shape: f32[16,32], index: 3, kind: input, shape index: {}]
  %s4 = inlined_call_operand.vmem [shape: f32[1,32], index: 4, kind: input, shape index: {}]
  %s5 = inlined_call_operand.vmem [shape: f32[32,64], index: 5, kind: input, shape index: {}]
  %s6 = inlined_call_operand.vmem [shape: f32[1,64], index: 6, kind: input, shape index: {}]
  %s7 = inlined_call_operand.vmem [shape: f32[64,128], index: 7, kind: input, shape index: {}]
  %s8 = inlined_call_operand.vmem [shape: f32[1,128], index: 8, kind: input, shape index: {}]
  %s9 = inlined_call_operand.vmem [shape: f32[128,64], index: 9, kind: input, shape index: {}]
  %s10 = inlined_call_operand.vmem [shape: f32[1,64], index: 10, kind: input, shape index: {}]
  %s11 = inlined_call_operand.vmem [shape: f32[64,32], index: 11, kind: input, shape index: {}]
  %s12 = inlined_call_operand.vmem [shape: f32[1,32], index: 12, kind: input, shape index: {}]
  %s13 = inlined_call_operand.hbm [shape: f32[8,32], index: 13, kind: output, shape index: {}]
  %s14 = sld [smem:[#allocation0]]
  $region93: #{tpu_custom_call.1} parent=0
    _
  %s16 = ssub.s32 1, %s14
  %s17 = scalar_select 0, %s16, %s14
  $region1: #{tpu_custom_call.1} parent=0
    #allocation3 [shape = 'u8[4096]{0}', space=vmem, size = 0x1000, scoped, tag = 'output window, operand 0, single buffered']
    #allocation4 [shape = 's32[2]{0}', space=sflag, size = 0x8, scoped, tag = 'scoped memory for tpu_custom_call.1']
    %18 = vsyncpa [#allocation4], 0
    loop: start=0, step=1, limit=4
    $region2: #{tpu_custom_call.1} parent=1 // loop_pre_header
      _
    $region3: #{tpu_custom_call.1} parent=1 // loop_header
      %s20 = sphi 0, %s24
      %p21 = scmp.ge.s32.totalorder %s20, 4
      %s27 = sphi 0, %s39
      %s28 = sphi 0, %s35
      %s29 = sphi 0, %s27
      %s30 = sphi 0, %s28
      %s31 = sphi 0, %s29
      %s32 = sphi 0, %s30
      %s44 = sphi 0, %s46
      %s47 = sphi 0, %s44
      %s48 = sphi 0, %s47
      %s64 = sphi 0, %s48
      %s70 = sphi 0, %s72
      %s73 = sphi 0, %s70
      %s74 = sphi 0, %s73
      %s90 = sphi 0, %s74
      %s96 = sphi 0, %s98
      %s99 = sphi 0, %s96
      %s100 = sphi 0, %s99
      %s116 = sphi 0, %s100
      %s120 = sphi 0, %s120
      %s122 = sphi 0, %s120
      %s123 = sphi 0, %s122
      %s137 = sphi 0, %s123
      %s141 = sphi 0, %s141
      %s143 = sphi 0, %s141
      %s144 = sphi 0, %s143
      %s158 = sphi 0, %s144
      %s162 = sphi 0, %s162
      %s164 = sphi 0, %s162
      %s165 = sphi 0, %s164
      %s179 = sphi 0, %s165
      %s183 = sphi 0, %s183
      %s185 = sphi 0, %s183
      %s186 = sphi 0, %s185
      %s200 = sphi 0, %s186
      %s204 = sphi 0, %s204
      %s206 = sphi 0, %s204
      %s207 = sphi 0, %s206
      %s221 = sphi 0, %s207
      %s225 = sphi 0, %s225
      %s227 = sphi 0, %s225
      %s228 = sphi 0, %s227
      %s242 = sphi 0, %s228
      %s246 = sphi 0, %s246
      %s248 = sphi 0, %s246
      %s249 = sphi 0, %s248
      %s263 = sphi 0, %s249
      %s267 = sphi 0, %s267
      %s269 = sphi 0, %s267
      %s270 = sphi 0, %s269
      %s284 = sphi 0, %s270
      %s288 = sphi 0, %s288
      %s290 = sphi 0, %s288
      %s291 = sphi 0, %s290
      %s305 = sphi 0, %s291
      %s309 = sphi 0, %s309
      %s311 = sphi 0, %s309
      %s312 = sphi 0, %s311
      %s326 = sphi 0, %s312
      %s332 = sphi 0, %s334
      %s335 = sphi 0, %s332
      %s336 = sphi 0, %s335
      %s352 = sphi 0, %s336
    $region4: #{tpu_custom_call.1} parent=1 // loop_header_branch
      %23 = sbr.rel (%p21) target = $region8
    $region5: #{tpu_custom_call.1} parent=1 // loop_body
      %s25 = ssub.s32 %s20, 1
      %s26 = ssub.s32 %s20, 2
      %s33 = sadd.s32 1, %s28
      %p34 = scmp.ge.s32.totalorder %s33, 2
      %s35 = scalar_select %p34, 0, %s33
      %s36 = sadd.s32 1, %s27
      %s37 = scalar_select %p34, %s36, %s27
      %p38 = scmp.ge.s32.totalorder %s37, 1
      %s39 = scalar_select %p38, 0, %s37
      %s40 = ssub.s32 %s27, %s39
      %s41 = ssub.s32 %s28, %s35
      %s42 = sor.u32 %s40, %s41
      %p43 = scmp.eq.s32.totalorder %s42, 0
      %s45 = sadd.s32 %s44, 1
      %s46 = scalar_select %p43, %s44, %s45
      %p49 = pneg %p43
      %p50 = scmp.eq.s32.totalorder %s20, 1
      %p51 = por %p49, %p50
      %p52 = scmp.ne.s32.totalorder %s44, %s47
      %p53 = scmp.eq.s32.totalorder %s20, 0
      %p54 = por %p52, %p53
      %p55 = scmp.ne.s32.totalorder %s44, %s47
      %p56 = scmp.eq.s32.totalorder %s25, 1
      %p57 = por %p55, %p56
      %p58 = scmp.ne.s32.totalorder %s47, %s48
      %p59 = scmp.eq.s32.totalorder %s25, 0
      %p60 = por %p58, %p59
      %p61 = scmp.ne.s32.totalorder %s47, %s48
      %p62 = scmp.eq.s32.totalorder %s26, 1
      %p63 = por %p61, %p62
      %p65 = scmp.ne.s32.totalorder %s48, %s64
      %p66 = scmp.eq.s32.totalorder %s26, 0
      %p67 = por %p65, %p66
      %s68 = ssub.s32 %s28, %s35
      %p69 = scmp.eq.s32.totalorder %s68, 0
      %s71 = sadd.s32 %s70, 1
      %s72 = scalar_select %p69, %s70, %s71
      %p75 = pneg %p69
      %p76 = scmp.eq.s32.totalorder %s20, 1
      %p77 = por %p75, %p76
      %p78 = scmp.ne.s32.totalorder %s70, %s73
      %p79 = scmp.eq.s32.totalorder %s20, 0
      %p80 = por %p78, %p79
      %p81 = scmp.ne.s32.totalorder %s70, %s73
      %p82 = scmp.eq.s32.totalorder %s25, 1
      %p83 = por %p81, %p82
      %p84 = scmp.ne.s32.totalorder %s73, %s74
      %p85 = scmp.eq.s32.totalorder %s25, 0
      %p86 = por %p84, %p85
      %p87 = scmp.ne.s32.totalorder %s73, %s74
      %p88 = scmp.eq.s32.totalorder %s26, 1
      %p89 = por %p87, %p88
      %p91 = scmp.ne.s32.totalorder %s74, %s90
      %p92 = scmp.eq.s32.totalorder %s26, 0
      %p93 = por %p91, %p92
      %s94 = ssub.s32 %s27, %s39
      %p95 = scmp.eq.s32.totalorder %s94, 0
      %s97 = sadd.s32 %s96, 1
      %s98 = scalar_select %p95, %s96, %s97
      %p101 = pneg %p95
      %p102 = scmp.eq.s32.totalorder %s20, 1
      %p103 = por %p101, %p102
      %p104 = scmp.ne.s32.totalorder %s96, %s99
      %p105 = scmp.eq.s32.totalorder %s20, 0
      %p106 = por %p104, %p105
      %p107 = scmp.ne.s32.totalorder %s96, %s99
      %p108 = scmp.eq.s32.totalorder %s25, 1
      %p109 = por %p107, %p108
      %p110 = scmp.ne.s32.totalorder %s99, %s100
      %p111 = scmp.eq.s32.totalorder %s25, 0
      %p112 = por %p110, %p111
      %p113 = scmp.ne.s32.totalorder %s99, %s100
      %p114 = scmp.eq.s32.totalorder %s26, 1
      %p115 = por %p113, %p114
      %p117 = scmp.ne.s32.totalorder %s100, %s116
      %p118 = scmp.eq.s32.totalorder %s26, 0
      %p119 = por %p117, %p118
      %s121 = sadd.s32 %s120, 1
      %p124 = scmp.eq.s32.totalorder %s20, 1
      %p125 = scmp.ne.s32.totalorder %s120, %s122
      %p126 = scmp.eq.s32.totalorder %s20, 0
      %p127 = por %p125, %p126
      %p128 = scmp.ne.s32.totalorder %s120, %s122
      %p129 = scmp.eq.s32.totalorder %s25, 1
      %p130 = por %p128, %p129
      %p131 = scmp.ne.s32.totalorder %s122, %s123
      %p132 = scmp.eq.s32.totalorder %s25, 0
      %p133 = por %p131, %p132
      %p134 = scmp.ne.s32.totalorder %s122, %s123
      %p135 = scmp.eq.s32.totalorder %s26, 1
      %p136 = por %p134, %p135
      %p138 = scmp.ne.s32.totalorder %s123, %s137
      %p139 = scmp.eq.s32.totalorder %s26, 0
      %p140 = por %p138, %p139
      %s142 = sadd.s32 %s141, 1
      %p145 = scmp.eq.s32.totalorder %s20, 1
      %p146 = scmp.ne.s32.totalorder %s141, %s143
      %p147 = scmp.eq.s32.totalorder %s20, 0
      %p148 = por %p146, %p147
      %p149 = scmp.ne.s32.totalorder %s141, %s143
      %p150 = scmp.eq.s32.totalorder %s25, 1
      %p151 = por %p149, %p150
      %p152 = scmp.ne.s32.totalorder %s143, %s144
      %p153 = scmp.eq.s32.totalorder %s25, 0
      %p154 = por %p152, %p153
      %p155 = scmp.ne.s32.totalorder %s143, %s144
      %p156 = scmp.eq.s32.totalorder %s26, 1
      %p157 = por %p155, %p156
      %p159 = scmp.ne.s32.totalorder %s144, %s158
      %p160 = scmp.eq.s32.totalorder %s26, 0
      %p161 = por %p159, %p160
      %s163 = sadd.s32 %s162, 1
      %p166 = scmp.eq.s32.totalorder %s20, 1
      %p167 = scmp.ne.s32.totalorder %s162, %s164
      %p168 = scmp.eq.s32.totalorder %s20, 0
      %p169 = por %p167, %p168
      %p170 = scmp.ne.s32.totalorder %s162, %s164
      %p171 = scmp.eq.s32.totalorder %s25, 1
      %p172 = por %p170, %p171
      %p173 = scmp.ne.s32.totalorder %s164, %s165
      %p174 = scmp.eq.s32.totalorder %s25, 0
      %p175 = por %p173, %p174
      %p176 = scmp.ne.s32.totalorder %s164, %s165
      %p177 = scmp.eq.s32.totalorder %s26, 1
      %p178 = por %p176, %p177
      %p180 = scmp.ne.s32.totalorder %s165, %s179
      %p181 = scmp.eq.s32.totalorder %s26, 0
      %p182 = por %p180, %p181
      %s184 = sadd.s32 %s183, 1
      %p187 = scmp.eq.s32.totalorder %s20, 1
      %p188 = scmp.ne.s32.totalorder %s183, %s185
      %p189 = scmp.eq.s32.totalorder %s20, 0
      %p190 = por %p188, %p189
      %p191 = scmp.ne.s32.totalorder %s183, %s185
      %p192 = scmp.eq.s32.totalorder %s25, 1
      %p193 = por %p191, %p192
      %p194 = scmp.ne.s32.totalorder %s185, %s186
      %p195 = scmp.eq.s32.totalorder %s25, 0
      %p196 = por %p194, %p195
      %p197 = scmp.ne.s32.totalorder %s185, %s186
      %p198 = scmp.eq.s32.totalorder %s26, 1
      %p199 = por %p197, %p198
      %p201 = scmp.ne.s32.totalorder %s186, %s200
      %p202 = scmp.eq.s32.totalorder %s26, 0
      %p203 = por %p201, %p202
      %s205 = sadd.s32 %s204, 1
      %p208 = scmp.eq.s32.totalorder %s20, 1
      %p209 = scmp.ne.s32.totalorder %s204, %s206
      %p210 = scmp.eq.s32.totalorder %s20, 0
      %p211 = por %p209, %p210
      %p212 = scmp.ne.s32.totalorder %s204, %s206
      %p213 = scmp.eq.s32.totalorder %s25, 1
      %p214 = por %p212, %p213
      %p215 = scmp.ne.s32.totalorder %s206, %s207
      %p216 = scmp.eq.s32.totalorder %s25, 0
      %p217 = por %p215, %p216
      %p218 = scmp.ne.s32.totalorder %s206, %s207
      %p219 = scmp.eq.s32.totalorder %s26, 1
      %p220 = por %p218, %p219
      %p222 = scmp.ne.s32.totalorder %s207, %s221
      %p223 = scmp.eq.s32.totalorder %s26, 0
      %p224 = por %p222, %p223
      %s226 = sadd.s32 %s225, 1
      %p229 = scmp.eq.s32.totalorder %s20, 1
      %p230 = scmp.ne.s32.totalorder %s225, %s227
      %p231 = scmp.eq.s32.totalorder %s20, 0
      %p232 = por %p230, %p231
      %p233 = scmp.ne.s32.totalorder %s225, %s227
      %p234 = scmp.eq.s32.totalorder %s25, 1
      %p235 = por %p233, %p234
      %p236 = scmp.ne.s32.totalorder %s227, %s228
      %p237 = scmp.eq.s32.totalorder %s25, 0
      %p238 = por %p236, %p237
      %p239 = scmp.ne.s32.totalorder %s227, %s228
      %p240 = scmp.eq.s32.totalorder %s26, 1
      %p241 = por %p239, %p240
      %p243 = scmp.ne.s32.totalorder %s228, %s242
      %p244 = scmp.eq.s32.totalorder %s26, 0
      %p245 = por %p243, %p244
      %s247 = sadd.s32 %s246, 1
      %p250 = scmp.eq.s32.totalorder %s20, 1
      %p251 = scmp.ne.s32.totalorder %s246, %s248
      %p252 = scmp.eq.s32.totalorder %s20, 0
      %p253 = por %p251, %p252
      %p254 = scmp.ne.s32.totalorder %s246, %s248
      %p255 = scmp.eq.s32.totalorder %s25, 1
      %p256 = por %p254, %p255
      %p257 = scmp.ne.s32.totalorder %s248, %s249
      %p258 = scmp.eq.s32.totalorder %s25, 0
      %p259 = por %p257, %p258
      %p260 = scmp.ne.s32.totalorder %s248, %s249
      %p261 = scmp.eq.s32.totalorder %s26, 1
      %p262 = por %p260, %p261
      %p264 = scmp.ne.s32.totalorder %s249, %s263
      %p265 = scmp.eq.s32.totalorder %s26, 0
      %p266 = por %p264, %p265
      %s268 = sadd.s32 %s267, 1
      %p271 = scmp.eq.s32.totalorder %s20, 1
      %p272 = scmp.ne.s32.totalorder %s267, %s269
      %p273 = scmp.eq.s32.totalorder %s20, 0
      %p274 = por %p272, %p273
      %p275 = scmp.ne.s32.totalorder %s267, %s269
      %p276 = scmp.eq.s32.totalorder %s25, 1
      %p277 = por %p275, %p276
      %p278 = scmp.ne.s32.totalorder %s269, %s270
      %p279 = scmp.eq.s32.totalorder %s25, 0
      %p280 = por %p278, %p279
      %p281 = scmp.ne.s32.totalorder %s269, %s270
      %p282 = scmp.eq.s32.totalorder %s26, 1
      %p283 = por %p281, %p282
      %p285 = scmp.ne.s32.totalorder %s270, %s284
      %p286 = scmp.eq.s32.totalorder %s26, 0
      %p287 = por %p285, %p286
      %s289 = sadd.s32 %s288, 1
      %p292 = scmp.eq.s32.totalorder %s20, 1
      %p293 = scmp.ne.s32.totalorder %s288, %s290
      %p294 = scmp.eq.s32.totalorder %s20, 0
      %p295 = por %p293, %p294
      %p296 = scmp.ne.s32.totalorder %s288, %s290
      %p297 = scmp.eq.s32.totalorder %s25, 1
      %p298 = por %p296, %p297
      %p299 = scmp.ne.s32.totalorder %s290, %s291
      %p300 = scmp.eq.s32.totalorder %s25, 0
      %p301 = por %p299, %p300
      %p302 = scmp.ne.s32.totalorder %s290, %s291
      %p303 = scmp.eq.s32.totalorder %s26, 1
      %p304 = por %p302, %p303
      %p306 = scmp.ne.s32.totalorder %s291, %s305
      %p307 = scmp.eq.s32.totalorder %s26, 0
      %p308 = por %p306, %p307
      %s310 = sadd.s32 %s309, 1
      %p313 = scmp.eq.s32.totalorder %s20, 1
      %p314 = scmp.ne.s32.totalorder %s309, %s311
      %p315 = scmp.eq.s32.totalorder %s20, 0
      %p316 = por %p314, %p315
      %p317 = scmp.ne.s32.totalorder %s309, %s311
      %p318 = scmp.eq.s32.totalorder %s25, 1
      %p319 = por %p317, %p318
      %p320 = scmp.ne.s32.totalorder %s311, %s312
      %p321 = scmp.eq.s32.totalorder %s25, 0
      %p322 = por %p320, %p321
      %p323 = scmp.ne.s32.totalorder %s311, %s312
      %p324 = scmp.eq.s32.totalorder %s26, 1
      %p325 = por %p323, %p324
      %p327 = scmp.ne.s32.totalorder %s312, %s326
      %p328 = scmp.eq.s32.totalorder %s26, 0
      %p329 = por %p327, %p328
      %s330 = ssub.s32 %s27, %s39
      %p331 = scmp.eq.s32.totalorder %s330, 0
      %s333 = sadd.s32 %s332, 1
      %s334 = scalar_select %p331, %s332, %s333
      %p337 = pneg %p331
      %p338 = scmp.eq.s32.totalorder %s20, 1
      %p339 = por %p337, %p338
      %p340 = scmp.ne.s32.totalorder %s332, %s335
      %p341 = scmp.eq.s32.totalorder %s20, 0
      %p342 = por %p340, %p341
      %p343 = scmp.ne.s32.totalorder %s332, %s335
      %p344 = scmp.eq.s32.totalorder %s25, 1
      %p345 = por %p343, %p344
      %p346 = scmp.ne.s32.totalorder %s335, %s336
      %p347 = scmp.eq.s32.totalorder %s25, 0
      %p348 = por %p346, %p347
      %p349 = scmp.ne.s32.totalorder %s335, %s336
      %p350 = scmp.eq.s32.totalorder %s26, 1
      %p351 = por %p349, %p350
      %p353 = scmp.ne.s32.totalorder %s336, %s352
      %p354 = scmp.eq.s32.totalorder %s26, 0
      %p355 = por %p353, %p354
      %p356 = scmp.le.s32.totalorder 1, %s20
      %p357 = scmp.lt.s32.totalorder %s20, 3
      %p358 = pnand %p356, %p357
      %p359 = pneg %p358
      // Predicated region
      $region9: #{tpu_custom_call.1} parent=5 // pred_check
        _
      $region10: #{tpu_custom_call.1} parent=5 // pred_check_branch
        %361 = sbr.rel (%p358) target = $region12
      $region11: #{tpu_custom_call.1} parent=5 // pred_region
        %s362 = ssub.s32 %s20, 1
        // Predicated region
        $region13: #{tpu_custom_call.1} parent=11 // pred_check
          %p363 = pneg %p112
        $region14: #{tpu_custom_call.1} parent=11 // pred_check_branch
          %365 = sbr.rel (%p363) target = $region16
        $region15: #{tpu_custom_call.1} parent=11 // pred_region
          %p366 = scmp.lt.s32.totalorder %s29, 0
          %s367 = scalar_select %p366, %s29, 0
          %s368 = smul.addr %s367, 8
          %s369 = scalar_lea.vmem %s2, %s368
        $region16: #{tpu_custom_call.1} parent=11 // pred_fallthru
          _
        // Predicated region
        $region17: #{tpu_custom_call.1} parent=11 // pred_check
          %p370 = pneg %p133
        $region18: #{tpu_custom_call.1} parent=11 // pred_check_branch
          %372 = sbr.rel (%p370) target = $region20
        $region19: #{tpu_custom_call.1} parent=11 // pred_region
          _
        $region20: #{tpu_custom_call.1} parent=11 // pred_fallthru
          _
        // Predicated region
        $region21: #{tpu_custom_call.1} parent=11 // pred_check
          %p373 = pneg %p154
        $region22: #{tpu_custom_call.1} parent=11 // pred_check_branch
          %375 = sbr.rel (%p373) target = $region24
        $region23: #{tpu_custom_call.1} parent=11 // pred_region
          _
        $region24: #{tpu_custom_call.1} parent=11 // pred_fallthru
          _
        // Predicated region
        $region25: #{tpu_custom_call.1} parent=11 // pred_check
          %p376 = pneg %p175
        $region26: #{tpu_custom_call.1} parent=11 // pred_check_branch
          %378 = sbr.rel (%p376) target = $region28
        $region27: #{tpu_custom_call.1} parent=11 // pred_region
          _
        $region28: #{tpu_custom_call.1} parent=11 // pred_fallthru
          _
        // Predicated region
        $region29: #{tpu_custom_call.1} parent=11 // pred_check
          %p379 = pneg %p196
        $region30: #{tpu_custom_call.1} parent=11 // pred_check_branch
          %381 = sbr.rel (%p379) target = $region32
        $region31: #{tpu_custom_call.1} parent=11 // pred_region
          _
        $region32: #{tpu_custom_call.1} parent=11 // pred_fallthru
          _
        // Predicated region
        $region33: #{tpu_custom_call.1} parent=11 // pred_check
          %p382 = pneg %p217
        $region34: #{tpu_custom_call.1} parent=11 // pred_check_branch
          %384 = sbr.rel (%p382) target = $region36
        $region35: #{tpu_custom_call.1} parent=11 // pred_region
          _
        $region36: #{tpu_custom_call.1} parent=11 // pred_fallthru
          _
        // Predicated region
        $region37: #{tpu_custom_call.1} parent=11 // pred_check
          %p385 = pneg %p238
        $region38: #{tpu_custom_call.1} parent=11 // pred_check_branch
          %387 = sbr.rel (%p385) target = $region40
        $region39: #{tpu_custom_call.1} parent=11 // pred_region
          _
        $region40: #{tpu_custom_call.1} parent=11 // pred_fallthru
          _
        // Predicated region
        $region41: #{tpu_custom_call.1} parent=11 // pred_check
          %p388 = pneg %p259
        $region42: #{tpu_custom_call.1} parent=11 // pred_check_branch
          %390 = sbr.rel (%p388) target = $region44
        $region43: #{tpu_custom_call.1} parent=11 // pred_region
          _
        $region44: #{tpu_custom_call.1} parent=11 // pred_fallthru
          _
        // Predicated region
        $region45: #{tpu_custom_call.1} parent=11 // pred_check
          %p391 = pneg %p280
        $region46: #{tpu_custom_call.1} parent=11 // pred_check_branch
          %393 = sbr.rel (%p391) target = $region48
        $region47: #{tpu_custom_call.1} parent=11 // pred_region
          _
        $region48: #{tpu_custom_call.1} parent=11 // pred_fallthru
          _
        // Predicated region
        $region49: #{tpu_custom_call.1} parent=11 // pred_check
          %p394 = pneg %p301
        $region50: #{tpu_custom_call.1} parent=11 // pred_check_branch
          %396 = sbr.rel (%p394) target = $region52
        $region51: #{tpu_custom_call.1} parent=11 // pred_region
          _
        $region52: #{tpu_custom_call.1} parent=11 // pred_fallthru
          _
        // Predicated region
        $region53: #{tpu_custom_call.1} parent=11 // pred_check
          %p397 = pneg %p322
        $region54: #{tpu_custom_call.1} parent=11 // pred_check_branch
          %399 = sbr.rel (%p397) target = $region56
        $region55: #{tpu_custom_call.1} parent=11 // pred_region
          _
        $region56: #{tpu_custom_call.1} parent=11 // pred_fallthru
          _
      $region12: #{tpu_custom_call.1} parent=5 // pred_fallthru
        _
      %p400 = scmp.lt.s32.totalorder %s20, 2
      // Predicated region
      $region57: #{tpu_custom_call.1} parent=5 // pred_check
        %p401 = pneg %p400
      $region58: #{tpu_custom_call.1} parent=5 // pred_check_branch
        %403 = sbr.rel (%p401) target = $region60
      $region59: #{tpu_custom_call.1} parent=5 // pred_region
        // Predicated region
        $region61: #{tpu_custom_call.1} parent=59 // pred_check
          %p404 = pneg %p54
        $region62: #{tpu_custom_call.1} parent=59 // pred_check_branch
          %406 = sbr.rel (%p404) target = $region64
        $region63: #{tpu_custom_call.1} parent=59 // pred_region
          %p407 = scmp.lt.s32.totalorder %s27, 0
          %s408 = scalar_select %p407, %s27, 0
          %p409 = scmp.lt.s32.totalorder %s28, 1
          %s410 = scalar_select %p409, %s28, 1
          %s411 = smul.addr %s408, 2
          %s412 = sadd.s32 %s410, %s411
          %s413 = smul.addr %s412, 8
          %s414 = scalar_lea.vmem %s0, %s413
        $region64: #{tpu_custom_call.1} parent=59 // pred_fallthru
          _
        // Predicated region
        $region65: #{tpu_custom_call.1} parent=59 // pred_check
          %p415 = pneg %p80
        $region66: #{tpu_custom_call.1} parent=59 // pred_check_branch
          %417 = sbr.rel (%p415) target = $region68
        $region67: #{tpu_custom_call.1} parent=59 // pred_region
          %s418 = smul.u32 16, %s28
          %p419 = scmp.lt.s32.totalorder %s418, 31
          %s420 = scalar_select %p419, %s418, 31
          %s421 = smul.addr %s420, 8
          %s422 = scalar_lea.vmem %s1, %s421
          %s423 = smul.u32 16, %s28
        $region68: #{tpu_custom_call.1} parent=59 // pred_fallthru
          _
      $region60: #{tpu_custom_call.1} parent=5 // pred_fallthru
        _
      %p424 = scmp.le.s32.totalorder 1, %s20
      %p425 = scmp.lt.s32.totalorder %s20, 3
      %p426 = pnand %p424, %p425
      %p427 = pneg %p426
      // Predicated region
      $region69: #{tpu_custom_call.1} parent=5 // pred_check
        _
      $region70: #{tpu_custom_call.1} parent=5 // pred_check_branch
        %429 = sbr.rel (%p426) target = $region72
      $region71: #{tpu_custom_call.1} parent=5 // pred_region
        %s430 = ssub.s32 %s20, 1
        %p431 = scmp.lt.s32.totalorder %s29, 0
        %s432 = scalar_select %p431, %s29, 0
        %p433 = scmp.lt.s32.totalorder %s30, 1
        %s434 = scalar_select %p433, %s30, 1
        %s435 = smul.addr %s432, 2
        %s436 = sadd.s32 %s434, %s435
        %s437 = smul.addr %s436, 8
        %s438 = scalar_lea.vmem %s0, %s437
        %p439 = pneg %p60
        %p440 = pneg %p57
        %s441 = smul.u32 16, %s30
        %p442 = scmp.lt.s32.totalorder %s441, 31
        %s443 = scalar_select %p442, %s441, 31
        %s444 = smul.addr %s443, 8
        %s445 = scalar_lea.vmem %s1, %s444
        %p446 = pneg %p86
        %p447 = pneg %p83
        %p448 = scmp.lt.s32.totalorder %s29, 0
        %s449 = scalar_select %p448, %s29, 0
        %s450 = smul.addr %s449, 8
        %s451 = scalar_lea.vmem %s2, %s450
        %p452 = pneg %p112
        %p453 = pneg %p109
        %p454 = pneg %p133
        %p455 = pneg %p130
        %p456 = pneg %p154
        %p457 = pneg %p151
        %p458 = pneg %p175
        %p459 = pneg %p172
        %p460 = pneg %p196
        %p461 = pneg %p193
        %p462 = pneg %p217
        %p463 = pneg %p214
        %p464 = pneg %p238
        %p465 = pneg %p235
        %p466 = pneg %p259
        %p467 = pneg %p256
        %p468 = pneg %p280
        %p469 = pneg %p277
        %p470 = pneg %p301
        %p471 = pneg %p298
        %p472 = pneg %p322
        %p473 = pneg %p319
        %p474 = pneg %p348
        %p475 = pneg %p345
        %p476 = scmp.lt.s32.totalorder %s29, 0
        %s477 = scalar_select %p476, %s29, 0
        %p478 = scmp.lt.s32.totalorder %s30, 1
        %s479 = scalar_select %p478, %s30, 1
        %s480 = smul.addr %s477, 2
        %s481 = sadd.s32 %s479, %s480
        %s482 = smul.addr %s481, 8
        %s483 = scalar_lea.vmem %s0, %s482
        %s484 = smul.u32 16, %s30
        %p485 = scmp.lt.s32.totalorder %s484, 31
        %s486 = scalar_select %p485, %s484, 31
        %s487 = smul.addr %s486, 8
        %s488 = scalar_lea.vmem %s1, %s487
        %s489 = smul.u32 16, %s30
        %p490 = scmp.lt.s32.totalorder %s29, 0
        %s491 = scalar_select %p490, %s29, 0
        %s492 = smul.addr %s491, 8
        %s493 = scalar_lea.vmem %s2, %s492
        %p494 = scmp.eq.s32.totalorder %s30, 0
        // Predicated region
        $region73: #{tpu_custom_call.1} parent=71 // pred_check
          %p495 = pneg %p494
        $region74: #{tpu_custom_call.1} parent=71 // pred_check_branch
          %497 = sbr.rel (%p495) target = $region76
        $region75: #{tpu_custom_call.1} parent=71 // pred_region
          %vm498 = vcmask 130048
          %499 = vst.msk [vmem:[#allocation2] sm:$0xff] %vm498, 0.0
        $region76: #{tpu_custom_call.1} parent=71 // pred_fallthru
          _
        %v500 = vld [vmem:[#allocation2] sm:$0xff]
        %v501 = vld [vmem:[%s483] sm:$0xff]
        %v502 = vld [vmem:[%s488] sm:$0xff]
        %v503 = vld [vmem:[%s488 + $0x8] sm:$0xff]
        %v504 = vld [vmem:[%s488 + $0x10] sm:$0xff]
        %v505 = vld [vmem:[%s488 + $0x18] sm:$0xff]
        %v506 = vld [vmem:[%s488 + $0x20] sm:$0xff]
        %v507 = vld [vmem:[%s488 + $0x28] sm:$0xff]
        %v508 = vld [vmem:[%s488 + $0x30] sm:$0xff]
        %v509 = vld [vmem:[%s488 + $0x38] sm:$0xff]
        %v510 = vld [vmem:[%s488 + $0x40] sm:$0xff]
        %v511 = vld [vmem:[%s488 + $0x48] sm:$0xff]
        %v512 = vld [vmem:[%s488 + $0x50] sm:$0xff]
        %v513 = vld [vmem:[%s488 + $0x58] sm:$0xff]
        %v514 = vld [vmem:[%s488 + $0x60] sm:$0xff]
        %v515 = vld [vmem:[%s488 + $0x68] sm:$0xff]
        %v516 = vld [vmem:[%s488 + $0x70] sm:$0xff]
        %v517 = vld [vmem:[%s488 + $0x78] sm:$0xff]
        %518 = vmatprep.subr.mxu0 0.0
        %519 = vmatpush1.msra.mxu0 %v502
        %520 = vmatprep.subr.mxu0 0.0
        %521 = vmatpush1.msra.mxu0 %v503
        %522 = vmatprep.subr.mxu0 0.0
        %523 = vmatpush1.msra.mxu0 %v504
        %524 = vmatprep.subr.mxu0 0.0
        %525 = vmatpush1.msra.mxu0 %v505
        %526 = vmatprep.subr.mxu0 0.0
        %527 = vmatpush1.msra.mxu0 %v506
        %528 = vmatprep.subr.mxu0 0.0
        %529 = vmatpush1.msra.mxu0 %v507
        %530 = vmatprep.subr.mxu0 0.0
        %531 = vmatpush1.msra.mxu0 %v508
        %532 = vmatprep.subr.mxu0 0.0
        %533 = vmatpush1.msra.mxu0 %v509
        %534 = vmatprep.subr.mxu0 0.0
        %535 = vmatpush1.msra.mxu0 %v510
        %536 = vmatprep.subr.mxu0 0.0
        %537 = vmatpush1.msra.mxu0 %v511
        %538 = vmatprep.subr.mxu0 0.0
        %539 = vmatpush1.msra.mxu0 %v512
        %540 = vmatprep.subr.mxu0 0.0
        %541 = vmatpush1.msra.mxu0 %v513
        %542 = vmatprep.subr.mxu0 0.0
        %543 = vmatpush1.msra.mxu0 %v514
        %544 = vmatprep.subr.mxu0 0.0
        %545 = vmatpush1.msra.mxu0 %v515
        %546 = vmatprep.subr.mxu0 0.0
        %547 = vmatpush1.msra.mxu0 %v516
        %548 = vmatprep.subr.mxu0 0.0
        %549 = vmatpush1.msra.mxu0 %v517
        %550 = vmatprep.subr.mxu0 0.0
        %551 = vmatpush1.msra.mxu0 0.0
        %552 = vmatprep.subr.mxu0 0.0
        %553 = vmatpush1.msra.mxu0 0.0
        %554 = vmatprep.subr.mxu0 0.0
        %555 = vmatpush1.msra.mxu0 0.0
        %556 = vmatprep.subr.mxu0 0.0
        %557 = vmatpush1.msra.mxu0 0.0
        %558 = vmatprep.subr.mxu0 0.0
        %559 = vmatpush1.msra.mxu0 0.0
        %560 = vmatprep.subr.mxu0 0.0
        %561 = vmatpush1.msra.mxu0 0.0
        %562 = vmatprep.subr.mxu0 0.0
        %563 = vmatpush1.msra.mxu0 0.0
        %564 = vmatprep.subr.mxu0 0.0
        %565 = vmatpush1.msra.mxu0 0.0
        %566 = vmatprep.subr.mxu0 0.0
        %567 = vmatpush1.msra.mxu0 0.0
        %568 = vmatprep.subr.mxu0 0.0
        %569 = vmatpush1.msra.mxu0 0.0
        %570 = vmatprep.subr.mxu0 0.0
        %571 = vmatpush1.msra.mxu0 0.0
        %572 = vmatprep.subr.mxu0 0.0
        %573 = vmatpush1.msra.mxu0 0.0
        %574 = vmatprep.subr.mxu0 0.0
        %575 = vmatpush1.msra.mxu0 0.0
        %576 = vmatprep.subr.mxu0 0.0
        %577 = vmatpush1.msra.mxu0 0.0
        %578 = vmatprep.subr.mxu0 0.0
        %579 = vmatpush1.msra.mxu0 0.0
        %580 = vmatprep.subr.mxu0 0.0
        %581 = vmatpush1.msra.mxu0 0.0
        %582 = vmatprep.mubr.f32.mxu0 0.0
        %583 = vmatmul.mubr.f32.gmra.mrb[0].mxu0 %v501
        %v584 = vpop.f32.mrb[0].mxu0
        %v585 = vadd.f32 0.0, %v584
        %v586 = vpop.f32.mrb[0].mxu0
        %587 = vdwg.mxu0
        %v588 = vadd.f32 %v500, %v585
        %vm589 = vcmask 130048
        %590 = vst.msk [vmem:[#allocation2] sm:$0xff] %vm589, %v588
        %p591 = scmp.eq.s32.totalorder %s30, 1
        // Predicated region
        $region77: #{tpu_custom_call.1} parent=71 // pred_check
          %p592 = pneg %p591
        $region78: #{tpu_custom_call.1} parent=71 // pred_check_branch
          %594 = sbr.rel (%p592) target = $region80
        $region79: #{tpu_custom_call.1} parent=71 // pred_region
          %v595 = vld [vmem:[#allocation2] sm:$0xff]
          %v596 = vld [vmem:[%s493] sm:$0xff]
          %598 = vset.pattern.permute.xlu0 0
          %599 = vperm.xlu0 %598, %v596
          %v600 = vpop.permute.xlu0 %599
          %v602 = vmul.f32 %v595, %v600
          %v603 = vld [vmem:[%s3] sm:$0xff]
          %v604 = vld [vmem:[%s3 + $0x8] sm:$0xff]
          %v605 = vld [vmem:[%s4] sm:$0x1]
          %v607 = vlaneseq
          %v608 = vshrl.u32 %v607, 7
          %v609 = vsub.s32 0, %v608
          %v610 = vrot.slane %v605, %v609
          %v613 = vsel %vm589, %v602, 0
          %615 = vmatprep.subr.mxu0 0.0
          %616 = vmatpush1.msra.mxu0 %v603
          %617 = vmatprep.subr.mxu0 0.0
          %618 = vmatpush1.msra.mxu0 %v604
          %619 = vmatprep.subr.mxu0 0.0
          %620 = vmatpush1.msra.mxu0 0.0
          %621 = vmatprep.subr.mxu0 0.0
          %622 = vmatpush1.msra.mxu0 0.0
          %623 = vmatprep.subr.mxu0 0.0
          %624 = vmatpush1.msra.mxu0 0.0
          %625 = vmatprep.subr.mxu0 0.0
          %626 = vmatpush1.msra.mxu0 0.0
          %627 = vmatprep.subr.mxu0 0.0
          %628 = vmatpush1.msra.mxu0 0.0
          %629 = vmatprep.subr.mxu0 0.0
          %630 = vmatpush1.msra.mxu0 0.0
          %631 = vmatprep.subr.mxu0 0.0
          %632 = vmatpush1.msra.mxu0 0.0
          %633 = vmatprep.subr.mxu0 0.0
          %634 = vmatpush1.msra.mxu0 0.0
          %635 = vmatprep.subr.mxu0 0.0
          %636 = vmatpush1.msra.mxu0 0.0
          %637 = vmatprep.subr.mxu0 0.0
          %638 = vmatpush1.msra.mxu0 0.0
          %639 = vmatprep.subr.mxu0 0.0
          %640 = vmatpush1.msra.mxu0 0.0
          %641 = vmatprep.subr.mxu0 0.0
          %642 = vmatpush1.msra.mxu0 0.0
          %643 = vmatprep.subr.mxu0 0.0
          %644 = vmatpush1.msra.mxu0 0.0
          %645 = vmatprep.subr.mxu0 0.0
          %646 = vmatpush1.msra.mxu0 0.0
          %647 = vmatprep.subr.mxu0 0.0
          %648 = vmatpush1.msra.mxu0 0.0
          %649 = vmatprep.subr.mxu0 0.0
          %650 = vmatpush1.msra.mxu0 0.0
          %651 = vmatprep.subr.mxu0 0.0
          %652 = vmatpush1.msra.mxu0 0.0
          %653 = vmatprep.subr.mxu0 0.0
          %654 = vmatpush1.msra.mxu0 0.0
          %655 = vmatprep.subr.mxu0 0.0
          %656 = vmatpush1.msra.mxu0 0.0
          %657 = vmatprep.subr.mxu0 0.0
          %658 = vmatpush1.msra.mxu0 0.0
          %659 = vmatprep.subr.mxu0 0.0
          %660 = vmatpush1.msra.mxu0 0.0
          %661 = vmatprep.subr.mxu0 0.0
          %662 = vmatpush1.msra.mxu0 0.0
          %663 = vmatprep.subr.mxu0 0.0
          %664 = vmatpush1.msra.mxu0 0.0
          %665 = vmatprep.subr.mxu0 0.0
          %666 = vmatpush1.msra.mxu0 0.0
          %667 = vmatprep.subr.mxu0 0.0
          %668 = vmatpush1.msra.mxu0 0.0
          %669 = vmatprep.subr.mxu0 0.0
          %670 = vmatpush1.msra.mxu0 0.0
          %671 = vmatprep.subr.mxu0 0.0
          %672 = vmatpush1.msra.mxu0 0.0
          %673 = vmatprep.subr.mxu0 0.0
          %674 = vmatpush1.msra.mxu0 0.0
          %675 = vmatprep.subr.mxu0 0.0
          %676 = vmatpush1.msra.mxu0 0.0
          %677 = vmatprep.subr.mxu0 0.0
          %678 = vmatpush1.msra.mxu0 0.0
          %679 = vmatprep.mubr.f32.mxu0 0.0
          %680 = vmatmul.mubr.f32.gmra.mrb[0].mxu0 %v613
          %v681 = vpop.f32.mrb[0].mxu0
          %v682 = vadd.f32 %v610, %v681
          %v683 = vpop.f32.mrb[0].mxu0
          %684 = vdwg.mxu0
          %v685 = vmax.f32 %v682, 0.0
          %v686 = vld [vmem:[%s5] sm:$0xff]
          %v687 = vld [vmem:[%s5 + $0x8] sm:$0xff]
          %v688 = vld [vmem:[%s5 + $0x10] sm:$0xff]
          %v689 = vld [vmem:[%s5 + $0x18] sm:$0xff]
          %v690 = vld [vmem:[%s6] sm:$0x1]
          %v692 = vlaneseq
          %v693 = vshrl.u32 %v692, 7
          %v694 = vsub.s32 0, %v693
          %v695 = vrot.slane %v690, %v694
          %vm697 = vcmask 261120
          %v699 = vsel %vm697, %v685, 0
          %701 = vmatprep.subr.mxu0 0.0
          %702 = vmatpush1.msra.mxu0 %v686
          %703 = vmatprep.subr.mxu0 0.0
          %704 = vmatpush1.msra.mxu0 %v687
          %705 = vmatprep.subr.mxu0 0.0
          %706 = vmatpush1.msra.mxu0 %v688
          %707 = vmatprep.subr.mxu0 0.0
          %708 = vmatpush1.msra.mxu0 %v689
          %709 = vmatprep.subr.mxu0 0.0
          %710 = vmatpush1.msra.mxu0 0.0
          %711 = vmatprep.subr.mxu0 0.0
          %712 = vmatpush1.msra.mxu0 0.0
          %713 = vmatprep.subr.mxu0 0.0
          %714 = vmatpush1.msra.mxu0 0.0
          %715 = vmatprep.subr.mxu0 0.0
          %716 = vmatpush1.msra.mxu0 0.0
          %717 = vmatprep.subr.mxu0 0.0
          %718 = vmatpush1.msra.mxu0 0.0
          %719 = vmatprep.subr.mxu0 0.0
          %720 = vmatpush1.msra.mxu0 0.0
          %721 = vmatprep.subr.mxu0 0.0
          %722 = vmatpush1.msra.mxu0 0.0
          %723 = vmatprep.subr.mxu0 0.0
          %724 = vmatpush1.msra.mxu0 0.0
          %725 = vmatprep.subr.mxu0 0.0
          %726 = vmatpush1.msra.mxu0 0.0
          %727 = vmatprep.subr.mxu0 0.0
          %728 = vmatpush1.msra.mxu0 0.0
          %729 = vmatprep.subr.mxu0 0.0
          %730 = vmatpush1.msra.mxu0 0.0
          %731 = vmatprep.subr.mxu0 0.0
          %732 = vmatpush1.msra.mxu0 0.0
          %733 = vmatprep.subr.mxu0 0.0
          %734 = vmatpush1.msra.mxu0 0.0
          %735 = vmatprep.subr.mxu0 0.0
          %736 = vmatpush1.msra.mxu0 0.0
          %737 = vmatprep.subr.mxu0 0.0
          %738 = vmatpush1.msra.mxu0 0.0
          %739 = vmatprep.subr.mxu0 0.0
          %740 = vmatpush1.msra.mxu0 0.0
          %741 = vmatprep.subr.mxu0 0.0
          %742 = vmatpush1.msra.mxu0 0.0
          %743 = vmatprep.subr.mxu0 0.0
          %744 = vmatpush1.msra.mxu0 0.0
          %745 = vmatprep.subr.mxu0 0.0
          %746 = vmatpush1.msra.mxu0 0.0
          %747 = vmatprep.subr.mxu0 0.0
          %748 = vmatpush1.msra.mxu0 0.0
          %749 = vmatprep.subr.mxu0 0.0
          %750 = vmatpush1.msra.mxu0 0.0
          %751 = vmatprep.subr.mxu0 0.0
          %752 = vmatpush1.msra.mxu0 0.0
          %753 = vmatprep.subr.mxu0 0.0
          %754 = vmatpush1.msra.mxu0 0.0
          %755 = vmatprep.subr.mxu0 0.0
          %756 = vmatpush1.msra.mxu0 0.0
          %757 = vmatprep.subr.mxu0 0.0
          %758 = vmatpush1.msra.mxu0 0.0
          %759 = vmatprep.subr.mxu0 0.0
          %760 = vmatpush1.msra.mxu0 0.0
          %761 = vmatprep.subr.mxu0 0.0
          %762 = vmatpush1.msra.mxu0 0.0
          %763 = vmatprep.subr.mxu0 0.0
          %764 = vmatpush1.msra.mxu0 0.0
          %765 = vmatprep.mubr.f32.mxu0 0.0
          %766 = vmatmul.mubr.f32.gmra.mrb[0].mxu0 %v699
          %v767 = vpop.f32.mrb[0].mxu0
          %v768 = vadd.f32 %v695, %v767
          %v769 = vpop.f32.mrb[0].mxu0
          %770 = vdwg.mxu0
          %v771 = vmax.f32 %v768, 0.0
          %v772 = vld [vmem:[%s7] sm:$0xff]
          %v773 = vld [vmem:[%s7 + $0x8] sm:$0xff]
          %v774 = vld [vmem:[%s7 + $0x10] sm:$0xff]
          %v775 = vld [vmem:[%s7 + $0x18] sm:$0xff]
          %v776 = vld [vmem:[%s7 + $0x20] sm:$0xff]
          %v777 = vld [vmem:[%s7 + $0x28] sm:$0xff]
          %v778 = vld [vmem:[%s7 + $0x30] sm:$0xff]
          %v779 = vld [vmem:[%s7 + $0x38] sm:$0xff]
          %v780 = vld [vmem:[%s8] sm:$0x1]
          %v782 = vlaneseq
          %v783 = vshrl.u32 %v782, 7
          %v784 = vsub.s32 0, %v783
          %v785 = vrot.slane %v780, %v784
          %vm787 = vcmask 523264
          %v789 = vsel %vm787, %v771, 0
          %791 = vmatprep.subr.mxu0 0.0
          %792 = vmatpush1.msra.mxu0 %v772
          %793 = vmatprep.subr.mxu0 0.0
          %794 = vmatpush1.msra.mxu0 %v773
          %795 = vmatprep.subr.mxu0 0.0
          %796 = vmatpush1.msra.mxu0 %v774
          %797 = vmatprep.subr.mxu0 0.0
          %798 = vmatpush1.msra.mxu0 %v775
          %799 = vmatprep.subr.mxu0 0.0
          %800 = vmatpush1.msra.mxu0 %v776
          %801 = vmatprep.subr.mxu0 0.0
          %802 = vmatpush1.msra.mxu0 %v777
          %803 = vmatprep.subr.mxu0 0.0
          %804 = vmatpush1.msra.mxu0 %v778
          %805 = vmatprep.subr.mxu0 0.0
          %806 = vmatpush1.msra.mxu0 %v779
          %807 = vmatprep.subr.mxu0 0.0
          %808 = vmatpush1.msra.mxu0 0.0
          %809 = vmatprep.subr.mxu0 0.0
          %810 = vmatpush1.msra.mxu0 0.0
          %811 = vmatprep.subr.mxu0 0.0
          %812 = vmatpush1.msra.mxu0 0.0
          %813 = vmatprep.subr.mxu0 0.0
          %814 = vmatpush1.msra.mxu0 0.0
          %815 = vmatprep.subr.mxu0 0.0
          %816 = vmatpush1.msra.mxu0 0.0
          %817 = vmatprep.subr.mxu0 0.0
          %818 = vmatpush1.msra.mxu0 0.0
          %819 = vmatprep.subr.mxu0 0.0
          %820 = vmatpush1.msra.mxu0 0.0
          %821 = vmatprep.subr.mxu0 0.0
          %822 = vmatpush1.msra.mxu0 0.0
          %823 = vmatprep.subr.mxu0 0.0
          %824 = vmatpush1.msra.mxu0 0.0
          %825 = vmatprep.subr.mxu0 0.0
          %826 = vmatpush1.msra.mxu0 0.0
          %827 = vmatprep.subr.mxu0 0.0
          %828 = vmatpush1.msra.mxu0 0.0
          %829 = vmatprep.subr.mxu0 0.0
          %830 = vmatpush1.msra.mxu0 0.0
          %831 = vmatprep.subr.mxu0 0.0
          %832 = vmatpush1.msra.mxu0 0.0
          %833 = vmatprep.subr.mxu0 0.0
          %834 = vmatpush1.msra.mxu0 0.0
          %835 = vmatprep.subr.mxu0 0.0
          %836 = vmatpush1.msra.mxu0 0.0
          %837 = vmatprep.subr.mxu0 0.0
          %838 = vmatpush1.msra.mxu0 0.0
          %839 = vmatprep.subr.mxu0 0.0
          %840 = vmatpush1.msra.mxu0 0.0
          %841 = vmatprep.subr.mxu0 0.0
          %842 = vmatpush1.msra.mxu0 0.0
          %843 = vmatprep.subr.mxu0 0.0
          %844 = vmatpush1.msra.mxu0 0.0
          %845 = vmatprep.subr.mxu0 0.0
          %846 = vmatpush1.msra.mxu0 0.0
          %847 = vmatprep.subr.mxu0 0.0
          %848 = vmatpush1.msra.mxu0 0.0
          %849 = vmatprep.subr.mxu0 0.0
          %850 = vmatpush1.msra.mxu0 0.0
          %851 = vmatprep.subr.mxu0 0.0
          %852 = vmatpush1.msra.mxu0 0.0
          %853 = vmatprep.subr.mxu0 0.0
          %854 = vmatpush1.msra.mxu0 0.0
          %855 = vmatprep.mubr.f32.mxu0 0.0
          %856 = vmatmul.mubr.f32.gmra.mrb[0].mxu0 %v789
          %v857 = vpop.f32.mrb[0].mxu0
          %v858 = vadd.f32 %v785, %v857
          %v859 = vpop.f32.mrb[0].mxu0
          %860 = vdwg.mxu0
          %v861 = vmax.f32 %v858, 0.0
          %v862 = vld [vmem:[%s9] sm:$0xff]
          %v863 = vld [vmem:[%s9 + $0x8] sm:$0xff]
          %v864 = vld [vmem:[%s9 + $0x10] sm:$0xff]
          %v865 = vld [vmem:[%s9 + $0x18] sm:$0xff]
          %v866 = vld [vmem:[%s9 + $0x20] sm:$0xff]
          %v867 = vld [vmem:[%s9 + $0x28] sm:$0xff]
          %v868 = vld [vmem:[%s9 + $0x30] sm:$0xff]
          %v869 = vld [vmem:[%s9 + $0x38] sm:$0xff]
          %v870 = vld [vmem:[%s9 + $0x40] sm:$0xff]
          %v871 = vld [vmem:[%s9 + $0x48] sm:$0xff]
          %v872 = vld [vmem:[%s9 + $0x50] sm:$0xff]
          %v873 = vld [vmem:[%s9 + $0x58] sm:$0xff]
          %v874 = vld [vmem:[%s9 + $0x60] sm:$0xff]
          %v875 = vld [vmem:[%s9 + $0x68] sm:$0xff]
          %v876 = vld [vmem:[%s9 + $0x70] sm:$0xff]
          %v877 = vld [vmem:[%s9 + $0x78] sm:$0xff]
          %v878 = vld [vmem:[%s10] sm:$0x1]
          %v880 = vlaneseq
          %v881 = vshrl.u32 %v880, 7
          %v882 = vsub.s32 0, %v881
          %v883 = vrot.slane %v878, %v882
          %885 = vmatprep.subr.mxu0 0.0
          %886 = vmatpush1.msra.mxu0 %v862
          %887 = vmatprep.subr.mxu0 0.0
          %888 = vmatpush1.msra.mxu0 %v863
          %889 = vmatprep.subr.mxu0 0.0
          %890 = vmatpush1.msra.mxu0 %v864
          %891 = vmatprep.subr.mxu0 0.0
          %892 = vmatpush1.msra.mxu0 %v865
          %893 = vmatprep.subr.mxu0 0.0
          %894 = vmatpush1.msra.mxu0 %v866
          %895 = vmatprep.subr.mxu0 0.0
          %896 = vmatpush1.msra.mxu0 %v867
          %897 = vmatprep.subr.mxu0 0.0
          %898 = vmatpush1.msra.mxu0 %v868
          %899 = vmatprep.subr.mxu0 0.0
          %900 = vmatpush1.msra.mxu0 %v869
          %901 = vmatprep.subr.mxu0 0.0
          %902 = vmatpush1.msra.mxu0 %v870
          %903 = vmatprep.subr.mxu0 0.0
          %904 = vmatpush1.msra.mxu0 %v871
          %905 = vmatprep.subr.mxu0 0.0
          %906 = vmatpush1.msra.mxu0 %v872
          %907 = vmatprep.subr.mxu0 0.0
          %908 = vmatpush1.msra.mxu0 %v873
          %909 = vmatprep.subr.mxu0 0.0
          %910 = vmatpush1.msra.mxu0 %v874
          %911 = vmatprep.subr.mxu0 0.0
          %912 = vmatpush1.msra.mxu0 %v875
          %913 = vmatprep.subr.mxu0 0.0
          %914 = vmatpush1.msra.mxu0 %v876
          %915 = vmatprep.subr.mxu0 0.0
          %916 = vmatpush1.msra.mxu0 %v877
          %917 = vmatprep.subr.mxu0 0.0
          %918 = vmatpush1.msra.mxu0 0.0
          %919 = vmatprep.subr.mxu0 0.0
          %920 = vmatpush1.msra.mxu0 0.0
          %921 = vmatprep.subr.mxu0 0.0
          %922 = vmatpush1.msra.mxu0 0.0
          %923 = vmatprep.subr.mxu0 0.0
          %924 = vmatpush1.msra.mxu0 0.0
          %925 = vmatprep.subr.mxu0 0.0
          %926 = vmatpush1.msra.mxu0 0.0
          %927 = vmatprep.subr.mxu0 0.0
          %928 = vmatpush1.msra.mxu0 0.0
          %929 = vmatprep.subr.mxu0 0.0
          %930 = vmatpush1.msra.mxu0 0.0
          %931 = vmatprep.subr.mxu0 0.0
          %932 = vmatpush1.msra.mxu0 0.0
          %933 = vmatprep.subr.mxu0 0.0
          %934 = vmatpush1.msra.mxu0 0.0
          %935 = vmatprep.subr.mxu0 0.0
          %936 = vmatpush1.msra.mxu0 0.0
          %937 = vmatprep.subr.mxu0 0.0
          %938 = vmatpush1.msra.mxu0 0.0
          %939 = vmatprep.subr.mxu0 0.0
          %940 = vmatpush1.msra.mxu0 0.0
          %941 = vmatprep.subr.mxu0 0.0
          %942 = vmatpush1.msra.mxu0 0.0
          %943 = vmatprep.subr.mxu0 0.0
          %944 = vmatpush1.msra.mxu0 0.0
          %945 = vmatprep.subr.mxu0 0.0
          %946 = vmatpush1.msra.mxu0 0.0
          %947 = vmatprep.subr.mxu0 0.0
          %948 = vmatpush1.msra.mxu0 0.0
          %949 = vmatprep.mubr.f32.mxu0 0.0
          %950 = vmatmul.mubr.f32.gmra.mrb[0].mxu0 %v861
          %v951 = vpop.f32.mrb[0].mxu0
          %v952 = vadd.f32 %v883, %v951
          %v953 = vpop.f32.mrb[0].mxu0
          %954 = vdwg.mxu0
          %v955 = vmax.f32 %v952, 0.0
          %v956 = vld [vmem:[%s11] sm:$0xff]
          %v957 = vld [vmem:[%s11 + $0x8] sm:$0xff]
          %v958 = vld [vmem:[%s11 + $0x10] sm:$0xff]
          %v959 = vld [vmem:[%s11 + $0x18] sm:$0xff]
          %v960 = vld [vmem:[%s11 + $0x20] sm:$0xff]
          %v961 = vld [vmem:[%s11 + $0x28] sm:$0xff]
          %v962 = vld [vmem:[%s11 + $0x30] sm:$0xff]
          %v963 = vld [vmem:[%s11 + $0x38] sm:$0xff]
          %v964 = vld [vmem:[%s12] sm:$0x1]
          %v966 = vlaneseq
          %v967 = vshrl.u32 %v966, 7
          %v968 = vsub.s32 0, %v967
          %v969 = vrot.slane %v964, %v968
          %v972 = vsel %vm787, %v955, 0
          %974 = vmatprep.subr.mxu0 0.0
          %975 = vmatpush1.msra.mxu0 %v956
          %976 = vmatprep.subr.mxu0 0.0
          %977 = vmatpush1.msra.mxu0 %v957
          %978 = vmatprep.subr.mxu0 0.0
          %979 = vmatpush1.msra.mxu0 %v958
          %980 = vmatprep.subr.mxu0 0.0
          %981 = vmatpush1.msra.mxu0 %v959
          %982 = vmatprep.subr.mxu0 0.0
          %983 = vmatpush1.msra.mxu0 %v960
          %984 = vmatprep.subr.mxu0 0.0
          %985 = vmatpush1.msra.mxu0 %v961
          %986 = vmatprep.subr.mxu0 0.0
          %987 = vmatpush1.msra.mxu0 %v962
          %988 = vmatprep.subr.mxu0 0.0
          %989 = vmatpush1.msra.mxu0 %v963
          %990 = vmatprep.subr.mxu0 0.0
          %991 = vmatpush1.msra.mxu0 0.0
          %992 = vmatprep.subr.mxu0 0.0
          %993 = vmatpush1.msra.mxu0 0.0
          %994 = vmatprep.subr.mxu0 0.0
          %995 = vmatpush1.msra.mxu0 0.0
          %996 = vmatprep.subr.mxu0 0.0
          %997 = vmatpush1.msra.mxu0 0.0
          %998 = vmatprep.subr.mxu0 0.0
          %999 = vmatpush1.msra.mxu0 0.0
          %1000 = vmatprep.subr.mxu0 0.0
          %1001 = vmatpush1.msra.mxu0 0.0
          %1002 = vmatprep.subr.mxu0 0.0
          %1003 = vmatpush1.msra.mxu0 0.0
          %1004 = vmatprep.subr.mxu0 0.0
          %1005 = vmatpush1.msra.mxu0 0.0
          %1006 = vmatprep.subr.mxu0 0.0
          %1007 = vmatpush1.msra.mxu0 0.0
          %1008 = vmatprep.subr.mxu0 0.0
          %1009 = vmatpush1.msra.mxu0 0.0
          %1010 = vmatprep.subr.mxu0 0.0
          %1011 = vmatpush1.msra.mxu0 0.0
          %1012 = vmatprep.subr.mxu0 0.0
          %1013 = vmatpush1.msra.mxu0 0.0
          %1014 = vmatprep.subr.mxu0 0.0
          %1015 = vmatpush1.msra.mxu0 0.0
          %1016 = vmatprep.subr.mxu0 0.0
          %1017 = vmatpush1.msra.mxu0 0.0
          %1018 = vmatprep.subr.mxu0 0.0
          %1019 = vmatpush1.msra.mxu0 0.0
          %1020 = vmatprep.subr.mxu0 0.0
          %1021 = vmatpush1.msra.mxu0 0.0
          %1022 = vmatprep.subr.mxu0 0.0
          %1023 = vmatpush1.msra.mxu0 0.0
          %1024 = vmatprep.subr.mxu0 0.0
          %1025 = vmatpush1.msra.mxu0 0.0
          %1026 = vmatprep.subr.mxu0 0.0
          %1027 = vmatpush1.msra.mxu0 0.0
          %1028 = vmatprep.subr.mxu0 0.0
          %1029 = vmatpush1.msra.mxu0 0.0
          %1030 = vmatprep.subr.mxu0 0.0
          %1031 = vmatpush1.msra.mxu0 0.0
          %1032 = vmatprep.subr.mxu0 0.0
          %1033 = vmatpush1.msra.mxu0 0.0
          %1034 = vmatprep.subr.mxu0 0.0
          %1035 = vmatpush1.msra.mxu0 0.0
          %1036 = vmatprep.subr.mxu0 0.0
          %1037 = vmatpush1.msra.mxu0 0.0
          %1038 = vmatprep.mubr.f32.mxu0 0.0
          %1039 = vmatmul.mubr.f32.gmra.mrb[0].mxu0 %v972
          %v1040 = vpop.f32.mrb[0].mxu0
          %v1041 = vadd.f32 %v969, %v1040
          %v1042 = vpop.f32.mrb[0].mxu0
          %1043 = vdwg.mxu0
          %v1044 = vmax.f32 %v1041, 0.0
          %1045 = vst.msk [vmem:[#allocation3] sm:$0xff] %vm697, %v1044
        $region80: #{tpu_custom_call.1} parent=71 // pred_fallthru
          _
        // Predicated region
        $region81: #{tpu_custom_call.1} parent=71 // pred_check
          %p1046 = pneg %p345
        $region82: #{tpu_custom_call.1} parent=71 // pred_check_branch
          %1048 = sbr.rel (%p1046) target = $region84
        $region83: #{tpu_custom_call.1} parent=71 // pred_region
          %s1050 = ssub.s32 128, 128
          %1051 = vsyncadd [#allocation4], %s1050
          %s1052 = smul.addr %s29, 128
          %s1053 = scalar_lea.hbm %s13, %s1052
          %s1055 = sshll.u32 [#allocation3], 4
          %s1056 = int_to_ptr.vmem [resolvable:$true] %s1055
          %1058 = dma.vmem_to_hbm [thread:$0]  %s1056, 128, %s1053, [#allocation4]
        $region84: #{tpu_custom_call.1} parent=71 // pred_fallthru
          _
        // Predicated region
        $region85: #{tpu_custom_call.1} parent=71 // pred_check
          %p1059 = pneg %p345
        $region86: #{tpu_custom_call.1} parent=71 // pred_check_branch
          %1061 = sbr.rel (%p1059) target = $region88
        $region87: #{tpu_custom_call.1} parent=71 // pred_region
          %1062 = dma.done [#allocation4], 128
        $region88: #{tpu_custom_call.1} parent=71 // pred_fallthru
          _
      $region72: #{tpu_custom_call.1} parent=5 // pred_fallthru
        _
      %p1063 = scmp.le.s32.totalorder 2, %s20
      // Predicated region
      $region89: #{tpu_custom_call.1} parent=5 // pred_check
        %p1064 = pneg %p1063
      $region90: #{tpu_custom_call.1} parent=5 // pred_check_branch
        %1066 = sbr.rel (%p1064) target = $region92
      $region91: #{tpu_custom_call.1} parent=5 // pred_region
        %s1067 = ssub.s32 %s20, 2
      $region92: #{tpu_custom_call.1} parent=5 // pred_fallthru
        _
    $region6: #{tpu_custom_call.1} parent=1 // loop_footer
      %s24 = sadd.s32 1, %s20
    $region7: #{tpu_custom_call.1} parent=1 // loop_footer_branch
      %19 = sbr.rel target = $region3
    $region8: #{tpu_custom_call.1} parent=1 // loop_exit
      _
    %1068 = vsyncpa [#allocation4], 1
    %s1069 = scalar_lea.sflag [#allocation4], 1
    %1070 = vsyncpa %s1069, 1

</llo_original>
